<compile_context>
chip_gen: v5e
topology: v5e:2x2
jax: 0.10.0
libtpu: 0.0.40
codegen_flags: <defaults>
</compile_context>

<pallas_src>
import functools

import jax
import jax.numpy as jnp
from jax import lax
from jax.experimental import pallas as pl
from jax.experimental.pallas import tpu as pltpu


def _round_up(x, m):
    return ((x + m - 1) // m) * m


def _cdiv(a, b):
    return (a + b - 1) // b


_STATIC_UNROLL_LIMIT = 64   # fully static unroll for up to this many chunks


def _overlap_add_kernel(x_ref, o_ref, *, S, C, step, ts):
    """x_ref: (tm, S*C) VMEM block; o_ref: (tm, ts) VMEM block."""
    tm = o_ref.shape[0]

    # Fast path: non-overlapping, gap-free chunks -> pure dense copy.
    if step == C:
        o_ref[...] = x_ref[...]
        return

    R = max(1, _cdiv(C, step))       # number of chunks overlapping a position
    dense_first = (C % step == 0)    # residue class 0 tiles its range exactly

    if dense_first:
        # Class 0 writes its coverage with '='; only the tail needs zeroing.
        n0 = _cdiv(S, R)
        covered = (n0 - 1) * R * step + C
        if covered < ts:
            o_ref[:, covered:ts] = jnp.zeros((tm, ts - covered), o_ref.dtype)
    else:
        o_ref[...] = jnp.zeros_like(o_ref)

    # Residue-class ordering: within class r the chunks s = r, r+R, ... write
    # disjoint (touching) lane ranges, so consecutive iterations carry no
    # RAW dependence on the same output vregs and vld/vadd/vst can overlap.
    # TODO(synk): the fully lane-dense R-slab formulation needs the input
    # physically reordered (s, r, k) -> (r, s, k); doing that in the wrapper
    # costs an extra full HBM pass, so we keep the read-once layout and only
    # reorder the accumulation here.
    for r in range(R):
        n_r = _cdiv(S - r, R) if S > r else 0
        if n_r <= 0:
            continue
        first_write = dense_first and r == 0

        if S <= _STATIC_UNROLL_LIMIT:
            for j in range(n_r):
                s = r + j * R
                t0 = s * step
                src = x_ref[:, s * C:(s + 1) * C]
                if first_write:
                    o_ref[:, t0:t0 + C] = src
                else:
                    o_ref[:, t0:t0 + C] += src
        else:
            align_o = step & (-step)   # largest power of two dividing step
            align_x = C & (-C)

            def body(j, carry, r=r, first_write=first_write,
                     align_o=align_o, align_x=align_x):
                s = r + j * R
                t0 = s * step
                xs = s * C
                if align_o > 1:
                    t0 = pl.multiple_of(t0, align_o)
                if align_x > 1:
                    xs = pl.multiple_of(xs, align_x)
                src = x_ref[:, pl.ds(xs, C)]
                if first_write:
                    o_ref[:, pl.ds(t0, C)] = src
                else:
                    o_ref[:, pl.ds(t0, C)] += src
                return carry

            lax.fori_loop(0, n_r, body, None,
                          unroll=4 if n_r >= 4 else True)


def overlap_add(data, chunk_size, step_size):
    """Pallas TPU implementation of OverlapAdd.forward.

    Args:
        data: (batch_size, num_features, S, chunk_size)
    Returns:
        (batch_size, num_features, ts), ts = (S-1)*step_size + chunk_size.
    """
    B, F, S, C = data.shape
    assert C == chunk_size, "last dim must equal chunk_size"
    assert step_size >= 1
    ts = (S - 1) * step_size + C
    M = B * F
    itemsize = jnp.dtype(data.dtype).itemsize
    # dtype-aware sublane granularity: f32 -> 8, bf16 -> 16, int8/fp8 -> 32.
    sub = {4: 8, 2: 16, 1: 32}.get(itemsize, 8)

    # Per-generation VMEM budget (v5e/v6e: 128 MiB, v7x: 64 MiB physical).
    try:
        vmem_cap = int(pltpu.get_tpu_info().vmem_capacity_bytes)
    except Exception:
        vmem_cap = 64 * 1024 * 1024
    if vmem_cap < 32 * 1024 * 1024:
        vmem_cap = 64 * 1024 * 1024
    vmem_limit = min(vmem_cap * 3 // 4, 100 * 1024 * 1024)
    budget = vmem_limit - 2 * 1024 * 1024

    bytes_per_row = (S * C + ts) * itemsize           # one input + output row
    # Input and output blocks are both double-buffered by the pipeline.
    tm_fit = budget // (2 * bytes_per_row)
    tm_cap = max(sub, min(1024, (tm_fit // sub) * sub))
    tm_cap = min(tm_cap, _round_up(M, sub))           # never larger than M
    if M > sub:
        # v7x megacore / DMA-compute overlap: keep at least 2 grid steps,
        # prefer >=8 but never shrink tiles below ~256 rows just for that.
        tm_cap = min(tm_cap, max(sub, _round_up(_cdiv(M, 2), sub)))
        pref8 = _round_up(_cdiv(M, 8), sub)
        if pref8 >= 256:
            tm_cap = min(tm_cap, pref8)
    # TODO(synk): for very long sequences where even sub rows of (S*C + ts)
    # exceed the VMEM budget, also grid over S with the output tile resident
    # across that ("arbitrary") axis.

    # Pick tm minimizing modeled cost: HBM traffic of the padded problem
    # + ~0.35us fixed cost per grid step (+ wrapper pad/slice copies when
    # padding is required).  No "tm must divide M" constraint.
    STEP_OVERHEAD_BYTES = 500_000
    if M < sub:
        tm = M                       # block dim == full array dim is legal
    else:
        best = None
        for cand in range(sub, tm_cap + 1, sub):
            mp = _round_up(M, cand)
            cost = mp * bytes_per_row + (mp // cand) * STEP_OVERHEAD_BYTES
            if mp != M:
                cost += 2 * M * bytes_per_row   # wrapper pad + output slice
            key = (cost, -cand)
            if best is None or key < best[0]:
                best = (key, cand)
        tm = best[1]
    M_pad = _round_up(M, tm)

    x = data.reshape(M, S * C)                        # contiguous, free
    if M_pad != M:
        x = jnp.pad(x, ((0, M_pad - M), (0, 0)))

    kernel = functools.partial(
        _overlap_add_kernel, S=S, C=C, step=step_size, ts=ts)

    cost = pl.CostEstimate(
        flops=M_pad * S * C,                          # one add per input element
        transcendentals=0,
        bytes_accessed=M_pad * bytes_per_row,
    )

    out = pl.pallas_call(
        kernel,
        out_shape=jax.ShapeDtypeStruct((M_pad, ts), data.dtype),
        grid=(M_pad // tm,),
        in_specs=[pl.BlockSpec((tm, S * C), lambda m: (m, 0))],
        out_specs=pl.BlockSpec((tm, ts), lambda m: (m, 0)),
        compiler_params=pltpu.CompilerParams(
            dimension_semantics=("parallel",),
            vmem_limit_bytes=vmem_limit),
        cost_estimate=cost,
    )(x)

    if M_pad != M:
        out = out[:M]
    return out.reshape(B, F, ts)


def _overlap_add_ref(data, chunk_size, step_size):
    """Pure-JAX reference of the F.fold-based overlap-add, for verification."""
    B, F, S, C = data.shape
    ts = (S - 1) * step_size + C
    out = jnp.zeros((B, F, ts), dtype=data.dtype)
    for s in range(S):
        out = out.at[:, :, s * step_size:s * step_size + C].add(
            data[:, :, s, :])
    return out


if __name__ == "__main__":
    chunk_size = 16
    step_size = 8
    batch_size, num_features, S = 2, 4, 8   # -> ts = 7*8 + 16 = 72

    key = jax.random.PRNGKey(0)
    data = jax.random.normal(
        key, (batch_size, num_features, S, chunk_size), dtype=jnp.float32)

    out = overlap_add(data, chunk_size, step_size)
    out = jax.block_until_ready(out)

    ref = _overlap_add_ref(data, chunk_size, step_size)
    assert out.shape == (batch_size, num_features,
                         (S - 1) * step_size + chunk_size)
    assert jnp.allclose(out, ref, atol=1e-5, rtol=1e-5), "mismatch vs reference"

    print("KERNEL_OK")
</pallas_src>

<mosaic_0001>
module attributes {stable_mosaic.version = 11 : i64} {
  func.func @_overlap_add_kernel(%arg0: i32, %arg1: memref<8x128xf32, #tpu.memory_space<vmem>>, %arg2: memref<8x72xf32, #tpu.memory_space<vmem>>) attributes {dimension_semantics = [#tpu.dimension_semantics<parallel>], iteration_bounds = array<i64: 1>, scalar_prefetch = 0 : i64, scratch_operands = 0 : i64, tpu.core_type = #tpu.core_type<tc>, window_params = [{transform_indices = @transform_0, window_bounds = array<i64: 8, 128>}, {transform_indices = @transform_1, window_bounds = array<i64: 8, 72>}]} {
    %cst = arith.constant 0.000000e+00 : f32
    %0 = vector.broadcast %cst : f32 to vector<8x8xf32>
    %c0 = arith.constant 0 : index
    %c64 = arith.constant 64 : index
    %1 = vector.load %arg2[%c0, %c64] : memref<8x72xf32, #tpu.memory_space<vmem>>, vector<8x8xf32>
    tpu.vector_store %arg2[%c0, %c64], %0 {strides = array<i32>} : memref<8x72xf32, #tpu.memory_space<vmem>>, vector<8x8xf32>,
    %c0_0 = arith.constant 0 : index
    %c0_1 = arith.constant 0 : index
    %2 = vector.load %arg1[%c0_0, %c0_1] : memref<8x128xf32, #tpu.memory_space<vmem>>, vector<8x16xf32>
    %c0_2 = arith.constant 0 : index
    %c0_3 = arith.constant 0 : index
    %3 = vector.load %arg2[%c0_2, %c0_3] : memref<8x72xf32, #tpu.memory_space<vmem>>, vector<8x16xf32>
    tpu.vector_store %arg2[%c0_2, %c0_3], %2 {strides = array<i32>} : memref<8x72xf32, #tpu.memory_space<vmem>>, vector<8x16xf32>,
    %c0_4 = arith.constant 0 : index
    %c32 = arith.constant 32 : index
    %4 = vector.load %arg1[%c0_4, %c32] : memref<8x128xf32, #tpu.memory_space<vmem>>, vector<8x16xf32>
    %c0_5 = arith.constant 0 : index
    %c16 = arith.constant 16 : index
    %5 = vector.load %arg2[%c0_5, %c16] : memref<8x72xf32, #tpu.memory_space<vmem>>, vector<8x16xf32>
    tpu.vector_store %arg2[%c0_5, %c16], %4 {strides = array<i32>} : memref<8x72xf32, #tpu.memory_space<vmem>>, vector<8x16xf32>,
    %c0_6 = arith.constant 0 : index
    %c64_7 = arith.constant 64 : index
    %6 = vector.load %arg1[%c0_6, %c64_7] : memref<8x128xf32, #tpu.memory_space<vmem>>, vector<8x16xf32>
    %c0_8 = arith.constant 0 : index
    %c32_9 = arith.constant 32 : index
    %7 = vector.load %arg2[%c0_8, %c32_9] : memref<8x72xf32, #tpu.memory_space<vmem>>, vector<8x16xf32>
    tpu.vector_store %arg2[%c0_8, %c32_9], %6 {strides = array<i32>} : memref<8x72xf32, #tpu.memory_space<vmem>>, vector<8x16xf32>,
    %c0_10 = arith.constant 0 : index
    %c96 = arith.constant 96 : index
    %8 = vector.load %arg1[%c0_10, %c96] : memref<8x128xf32, #tpu.memory_space<vmem>>, vector<8x16xf32>
    %c0_11 = arith.constant 0 : index
    %c48 = arith.constant 48 : index
    %9 = vector.load %arg2[%c0_11, %c48] : memref<8x72xf32, #tpu.memory_space<vmem>>, vector<8x16xf32>
    tpu.vector_store %arg2[%c0_11, %c48], %8 {strides = array<i32>} : memref<8x72xf32, #tpu.memory_space<vmem>>, vector<8x16xf32>,
    %c0_12 = arith.constant 0 : index
    %c16_13 = arith.constant 16 : index
    %10 = vector.load %arg1[%c0_12, %c16_13] : memref<8x128xf32, #tpu.memory_space<vmem>>, vector<8x16xf32>
    %c0_14 = arith.constant 0 : index
    %c8 = arith.constant 8 : index
    %11 = vector.load %arg2[%c0_14, %c8] : memref<8x72xf32, #tpu.memory_space<vmem>>, vector<8x16xf32>
    %12 = arith.addf %11, %10 : vector<8x16xf32>
    %c0_15 = arith.constant 0 : index
    %c8_16 = arith.constant 8 : index
    %13 = vector.load %arg2[%c0_15, %c8_16] : memref<8x72xf32, #tpu.memory_space<vmem>>, vector<8x16xf32>
    tpu.vector_store %arg2[%c0_15, %c8_16], %12 {strides = array<i32>} : memref<8x72xf32, #tpu.memory_space<vmem>>, vector<8x16xf32>,
    %c0_17 = arith.constant 0 : index
    %c48_18 = arith.constant 48 : index
    %14 = vector.load %arg1[%c0_17, %c48_18] : memref<8x128xf32, #tpu.memory_space<vmem>>, vector<8x16xf32>
    %c0_19 = arith.constant 0 : index
    %c24 = arith.constant 24 : index
    %15 = vector.load %arg2[%c0_19, %c24] : memref<8x72xf32, #tpu.memory_space<vmem>>, vector<8x16xf32>
    %16 = arith.addf %15, %14 : vector<8x16xf32>
    %c0_20 = arith.constant 0 : index
    %c24_21 = arith.constant 24 : index
    %17 = vector.load %arg2[%c0_20, %c24_21] : memref<8x72xf32, #tpu.memory_space<vmem>>, vector<8x16xf32>
    tpu.vector_store %arg2[%c0_20, %c24_21], %16 {strides = array<i32>} : memref<8x72xf32, #tpu.memory_space<vmem>>, vector<8x16xf32>,
    %c0_22 = arith.constant 0 : index
    %c80 = arith.constant 80 : index
    %18 = vector.load %arg1[%c0_22, %c80] : memref<8x128xf32, #tpu.memory_space<vmem>>, vector<8x16xf32>
    %c0_23 = arith.constant 0 : index
    %c40 = arith.constant 40 : index
    %19 = vector.load %arg2[%c0_23, %c40] : memref<8x72xf32, #tpu.memory_space<vmem>>, vector<8x16xf32>
    %20 = arith.addf %19, %18 : vector<8x16xf32>
    %c0_24 = arith.constant 0 : index
    %c40_25 = arith.constant 40 : index
    %21 = vector.load %arg2[%c0_24, %c40_25] : memref<8x72xf32, #tpu.memory_space<vmem>>, vector<8x16xf32>
    tpu.vector_store %arg2[%c0_24, %c40_25], %20 {strides = array<i32>} : memref<8x72xf32, #tpu.memory_space<vmem>>, vector<8x16xf32>,
    %c0_26 = arith.constant 0 : index
    %c112 = arith.constant 112 : index
    %22 = vector.load %arg1[%c0_26, %c112] : memref<8x128xf32, #tpu.memory_space<vmem>>, vector<8x16xf32>
    %c0_27 = arith.constant 0 : index
    %c56 = arith.constant 56 : index
    %23 = vector.load %arg2[%c0_27, %c56] : memref<8x72xf32, #tpu.memory_space<vmem>>, vector<8x16xf32>
    %24 = arith.addf %23, %22 : vector<8x16xf32>
    %c0_28 = arith.constant 0 : index
    %c56_29 = arith.constant 56 : index
    %25 = vector.load %arg2[%c0_28, %c56_29] : memref<8x72xf32, #tpu.memory_space<vmem>>, vector<8x16xf32>
    tpu.vector_store %arg2[%c0_28, %c56_29], %24 {strides = array<i32>} : memref<8x72xf32, #tpu.memory_space<vmem>>, vector<8x16xf32>,
    return
  }
  func.func @transform_0(%arg0: i32) -> (i32, i32) {
    %c0_i32 = arith.constant 0 : i32
    %c0_i32_0 = arith.constant 0 : i32
    return %arg0, %c0_i32 : i32, i32
  }
  func.func @transform_1(%arg0: i32) -> (i32, i32) {
    %c0_i32 = arith.constant 0 : i32
    %c0_i32_0 = arith.constant 0 : i32
    return %arg0, %c0_i32 : i32, i32
  }
}

</mosaic_0001>

<llo_original>
// kernel: tpu_custom_call.1
$region0: #{tpu_custom_call.1}
  #allocation0 [shape = 'u32[]', space=smem, size = 0x4, offset = 0x4, fixed_abs, tag = 'smem constant byte address 0x4 - core index']
  #allocation1 [shape = 'u32[72,128]{1,0:T(1,128)}', space=vmem, size = 0x9000, scoped, tag = 'internal scratch']
  %s0 = inlined_call_operand.hbm [shape: f32[8,128], index: 0, kind: input, shape index: {}]
  %s1 = inlined_call_operand.hbm [shape: f32[8,72], index: 1, kind: output, shape index: {}]
  %s2 = sld [smem:[#allocation0]]
  $region18: #{tpu_custom_call.1} parent=0
    _
  %s4 = ssub.s32 1, %s2
  %s5 = scalar_select 0, %s4, %s2
  $region1: #{tpu_custom_call.1} parent=0
    #allocation2 [shape = 'u8[4096]{0}', space=vmem, size = 0x1000, scoped, tag = 'input window, operand 0, single buffered']
    #allocation3 [shape = 's32[1]{0}', space=sflag, size = 0x4, scoped, tag = 'scoped memory for tpu_custom_call.1']
    #allocation4 [shape = 's32[1]{0}', space=sflag, size = 0x4, scoped, tag = 'scoped memory for tpu_custom_call.1']
    #allocation5 [shape = 'u8[4096]{0}', space=vmem, size = 0x1000, scoped, tag = 'output window, operand 0, single buffered']
    %6 = vsyncpa [#allocation3], 0
    %7 = vsyncpa [#allocation4], 0
    // Predicated region
    $region2: #{tpu_custom_call.1} parent=1 // pred_check
      _
    $region3: #{tpu_custom_call.1} parent=1 // pred_check_branch
      %9 = sbr.rel (0) target = $region5
    $region4: #{tpu_custom_call.1} parent=1 // pred_region
      %11 = vsyncadd [#allocation3], 0
      %s13 = sshll.u32 %s0, 4
      %s14 = int_to_ptr.hbm [resolvable:$true] %s13
      %s15 = sshll.u32 [#allocation2], 4
      %s16 = int_to_ptr.vmem [resolvable:$true] %s15
      %18 = dma.hbm_to_vmem [thread:$0]  %s14, 128, %s16, [#allocation3]
    $region5: #{tpu_custom_call.1} parent=1 // pred_fallthru
      _
    // Predicated region
    $region6: #{tpu_custom_call.1} parent=1 // pred_check
      _
    $region7: #{tpu_custom_call.1} parent=1 // pred_check_branch
      %20 = sbr.rel (0) target = $region9
    $region8: #{tpu_custom_call.1} parent=1 // pred_region
      %22 = dma.done [#allocation3], 128
    $region9: #{tpu_custom_call.1} parent=1 // pred_fallthru
      _
    %vm23 = vcmask 589312
    %24 = vst.msk [vmem:[#allocation5] sm:$0xff] %vm23, 0.0
    %v25 = vld [vmem:[#allocation2] sm:$0xff]
    %vm26 = vcmask 130048
    %27 = vst.msk [vmem:[#allocation5] sm:$0xff] %vm26, %v25
    %v28 = vld [vmem:[#allocation2] sm:$0xff]
    %30 = vrot.lane.b32.xlu0 %v28, 112
    %v31 = vpop.permute.xlu0 %30
    %vm33 = vcmask 261248
    %34 = vst.msk [vmem:[#allocation5] sm:$0xff] %vm33, %v31
    %v35 = vld [vmem:[#allocation2] sm:$0xff]
    %37 = vrot.lane.b32.xlu0 %v35, 96
    %v38 = vpop.permute.xlu0 %37
    %vm40 = vcmask 392448
    %41 = vst.msk [vmem:[#allocation5] sm:$0xff] %vm40, %v38
    %v42 = vld [vmem:[#allocation2] sm:$0xff]
    %44 = vrot.lane.b32.xlu0 %v42, 80
    %v45 = vpop.permute.xlu0 %44
    %vm47 = vcmask 523648
    %48 = vst.msk [vmem:[#allocation5] sm:$0xff] %vm47, %v45
    %v49 = vld [vmem:[#allocation2] sm:$0xff]
    %v50 = vld [vmem:[#allocation5] sm:$0xff]
    %52 = vrot.lane.b32.xlu0 %v49, 120
    %v53 = vpop.permute.xlu0 %52
    %v55 = vadd.f32 %v50, %v53
    %vm56 = vcmask 195648
    %57 = vst.msk [vmem:[#allocation5] sm:$0xff] %vm56, %v55
    %v58 = vld [vmem:[#allocation2] sm:$0xff]
    %v59 = vld [vmem:[#allocation5] sm:$0xff]
    %61 = vrot.lane.b32.xlu0 %v58, 104
    %v62 = vpop.permute.xlu0 %61
    %v64 = vadd.f32 %v59, %v62
    %vm65 = vcmask 326848
    %66 = vst.msk [vmem:[#allocation5] sm:$0xff] %vm65, %v64
    %v67 = vld [vmem:[#allocation2] sm:$0xff]
    %v68 = vld [vmem:[#allocation5] sm:$0xff]
    %70 = vrot.lane.b32.xlu0 %v67, 88
    %v71 = vpop.permute.xlu0 %70
    %v73 = vadd.f32 %v68, %v71
    %vm74 = vcmask 458048
    %75 = vst.msk [vmem:[#allocation5] sm:$0xff] %vm74, %v73
    %v76 = vld [vmem:[#allocation2] sm:$0xff]
    %v77 = vld [vmem:[#allocation5] sm:$0xff]
    %79 = vrot.lane.b32.xlu0 %v76, 72
    %v80 = vpop.permute.xlu0 %79
    %v82 = vadd.f32 %v77, %v80
    %vm83 = vcmask 589248
    %84 = vst.msk [vmem:[#allocation5] sm:$0xff] %vm83, %v82
    // Predicated region
    $region10: #{tpu_custom_call.1} parent=1 // pred_check
      _
    $region11: #{tpu_custom_call.1} parent=1 // pred_check_branch
      %86 = sbr.rel (0) target = $region13
    $region12: #{tpu_custom_call.1} parent=1 // pred_region
      %88 = vsyncadd [#allocation4], 0
      %s90 = sshll.u32 [#allocation5], 4
      %s91 = int_to_ptr.vmem [resolvable:$true] %s90
      %s92 = sshll.u32 %s1, 4
      %s93 = int_to_ptr.hbm [resolvable:$true] %s92
      %95 = dma.vmem_to_hbm [thread:$0]  %s91, 128, %s93, [#allocation4]
    $region13: #{tpu_custom_call.1} parent=1 // pred_fallthru
      _
    // Predicated region
    $region14: #{tpu_custom_call.1} parent=1 // pred_check
      _
    $region15: #{tpu_custom_call.1} parent=1 // pred_check_branch
      %97 = sbr.rel (0) target = $region17
    $region16: #{tpu_custom_call.1} parent=1 // pred_region
      %99 = dma.done [#allocation4], 128
    $region17: #{tpu_custom_call.1} parent=1 // pred_fallthru
      _
    %100 = vsyncpa [#allocation3], 1
    %101 = vsyncpa [#allocation4], 1

</llo_original>
